<compile_context>
chip_gen: v7x
topology: tpu7x:2x2x1
jax: 0.10.0
libtpu: 0.0.40
codegen_flags: <defaults>
</compile_context>

<pallas_src>
import math

import jax
import jax.numpy as jnp
from jax.experimental import pallas as pl
from jax.experimental.pallas import tpu as pltpu

IN_F, H1_F, H2_F, OUT_F = 5, 60, 200, 2


def _sigmoid(x):
    # sigmoid(x) == 0.5 * tanh(0.5 * x) + 0.5 -> one EUP op per vreg,
    # no f32 divide on the VALU.
    return 0.5 * jnp.tanh(0.5 * x) + 0.5


def _mlp_kernel(x_ref, w1_ref, b1_ref, w2_ref, b2_ref, w3_ref, b3_ref, o_ref):
    # Transposed layout: batch on the lane axis.
    #   x_ref : (5,   TB) f32   streamed input tile (cast to bf16 here)
    #   w*    : bf16, PyTorch layout [out, in], VMEM-resident
    #   b*    : f32,  (out, 1) columns, lane-broadcast against (out, TB)
    #   o_ref : (2,   TB) f32   lane-dense output tile
    xT = x_ref[...].astype(jnp.bfloat16)
    h1 = _sigmoid(
        jnp.dot(w1_ref[...], xT, preferred_element_type=jnp.float32)
        + b1_ref[...]
    )
    h2 = _sigmoid(
        jnp.dot(w2_ref[...], h1.astype(jnp.bfloat16),
                preferred_element_type=jnp.float32)
        + b2_ref[...]
    )
    h3 = _sigmoid(
        jnp.dot(w3_ref[...], h2.astype(jnp.bfloat16),
                preferred_element_type=jnp.float32)
        + b3_ref[...]
    )
    o_ref[...] = h3.astype(o_ref.dtype)


def bijin2_forward(x, params, *, block_batch=2048):
    """x: [batch, 5] float32. params: dict of w1,b1,w2,b2,w3,b3 (see init_params)."""
    w1, b1 = params["w1"], params["b1"]
    w2, b2 = params["w2"], params["b2"]
    w3, b3 = params["w3"], params["b3"]
    batch = x.shape[0]

    # Batch tile (lane axis): multiple of 128, capped at block_batch, and also
    # capped near ceil(batch/2) so the grid has >=2 steps whenever possible
    # (feeds both TensorCores on v7x; harmless on v5e/v6e).
    half = pl.cdiv(batch, 2)
    tb = min(block_batch, max(128, ((half + 127) // 128) * 128))
    padded = pl.cdiv(batch, tb) * tb

    # Transpose once in the wrapper: (batch, 5) -> (5, padded). Tiny (5 rows).
    xT = x.T
    if padded != batch:
        xT = jnp.pad(xT, ((0, 0), (0, padded - batch)))

    grid = (padded // tb,)

    outT = pl.pallas_call(
        _mlp_kernel,
        out_shape=jax.ShapeDtypeStruct((OUT_F, padded), jnp.float32),
        grid=grid,
        in_specs=[
            # Streamed activation tile (batch on lanes).
            pl.BlockSpec((IN_F, tb), lambda i: (0, i)),
            # Grid-resident weights / biases (constant index maps).
            pl.BlockSpec((H1_F, IN_F), lambda i: (0, 0)),
            pl.BlockSpec((H1_F, 1), lambda i: (0, 0)),
            pl.BlockSpec((H2_F, H1_F), lambda i: (0, 0)),
            pl.BlockSpec((H2_F, 1), lambda i: (0, 0)),
            pl.BlockSpec((OUT_F, H2_F), lambda i: (0, 0)),
            pl.BlockSpec((OUT_F, 1), lambda i: (0, 0)),
        ],
        out_specs=pl.BlockSpec((OUT_F, tb), lambda i: (0, i)),
        compiler_params=pltpu.CompilerParams(
            dimension_semantics=("parallel",),
        ),
    )(xT, w1, b1, w2, b2, w3, b3)

    # (2, padded) -> (batch, 2)
    return outT[:, :batch].T


def _torch_linear_init(key, in_features, out_features):
    # Mimic torch.nn.Linear default init: U(-1/sqrt(in), 1/sqrt(in)).
    kw, kb = jax.random.split(key)
    bound = 1.0 / math.sqrt(in_features)
    # PyTorch layout [out, in]; stored once in bf16 (MXU operand dtype).
    w = jax.random.uniform(
        kw, (out_features, in_features), jnp.float32, -bound, bound
    )
    # Bias as an f32 column (out, 1): added to the f32 accumulator in-kernel.
    b = jax.random.uniform(kb, (out_features, 1), jnp.float32, -bound, bound)
    return w.astype(jnp.bfloat16), b


def init_params(key):
    k1, k2, k3 = jax.random.split(key, 3)
    w1, b1 = _torch_linear_init(k1, IN_F, H1_F)
    w2, b2 = _torch_linear_init(k2, H1_F, H2_F)
    w3, b3 = _torch_linear_init(k3, H2_F, OUT_F)
    return {"w1": w1, "b1": b1, "w2": w2, "b2": b2, "w3": w3, "b3": b3}


def _reference_forward(x, params):
    # Pure-JAX f32 reference (weights upcast from bf16; same values the kernel sees).
    def layer(h, w, b):
        return jax.nn.sigmoid(h @ w.astype(jnp.float32).T + b.T)

    h1 = layer(x, params["w1"], params["b1"])
    h2 = layer(h1, params["w2"], params["b2"])
    return layer(h2, params["w3"], params["b3"])


if __name__ == "__main__":
    key = jax.random.PRNGKey(0)
    k_params, k_x1, k_x2 = jax.random.split(key, 3)

    params = init_params(k_params)

    # Small-shape check (batch=8, in=5): single-tile path (tb=128, grid=1).
    x_small = jax.random.normal(k_x1, (8, IN_F), dtype=jnp.float32)
    out_small = jax.block_until_ready(bijin2_forward(x_small, params))
    ref_small = _reference_forward(x_small, params)
    assert out_small.shape == (8, OUT_F), out_small.shape
    # bf16 MXU operands for x/h -> relaxed tolerance vs. f32 reference.
    assert jnp.allclose(out_small, ref_small, atol=2e-2, rtol=2e-2), \
        "mismatch vs reference (small batch)"

    # Multi-tile grid + padding path (batch=1000 -> tb=512, padded=1024, grid=2).
    x_big = jax.random.normal(k_x2, (1000, IN_F), dtype=jnp.float32)
    out_big = jax.block_until_ready(bijin2_forward(x_big, params))
    ref_big = _reference_forward(x_big, params)
    assert out_big.shape == (1000, OUT_F), out_big.shape
    assert jnp.allclose(out_big, ref_big, atol=2e-2, rtol=2e-2), \
        "mismatch vs reference (tiled batch)"

    print("KERNEL_OK")
</pallas_src>

<mosaic_0001>
module attributes {stable_mosaic.version = 11 : i64} {
  func.func @_mlp_kernel(%arg0: i32, %arg1: memref<5x128xf32, #tpu.memory_space<vmem>>, %arg2: memref<60x5xbf16, #tpu.memory_space<vmem>>, %arg3: memref<60x1xf32, #tpu.memory_space<vmem>>, %arg4: memref<200x60xbf16, #tpu.memory_space<vmem>>, %arg5: memref<200x1xf32, #tpu.memory_space<vmem>>, %arg6: memref<2x200xbf16, #tpu.memory_space<vmem>>, %arg7: memref<2x1xf32, #tpu.memory_space<vmem>>, %arg8: memref<2x128xf32, #tpu.memory_space<vmem>>) attributes {dimension_semantics = [#tpu.dimension_semantics<parallel>], iteration_bounds = array<i64: 1>, scalar_prefetch = 0 : i64, scratch_operands = 0 : i64, tpu.core_type = #tpu.core_type<tc>, window_params = [{transform_indices = @transform_0, window_bounds = array<i64: 5, 128>}, {pipeline_mode = #tpu.pipeline_mode<synchronous>, transform_indices = @transform_1, window_bounds = array<i64: 60, 5>}, {pipeline_mode = #tpu.pipeline_mode<synchronous>, transform_indices = @transform_2, window_bounds = array<i64: 60, 1>}, {pipeline_mode = #tpu.pipeline_mode<synchronous>, transform_indices = @transform_3, window_bounds = array<i64: 200, 60>}, {pipeline_mode = #tpu.pipeline_mode<synchronous>, transform_indices = @transform_4, window_bounds = array<i64: 200, 1>}, {pipeline_mode = #tpu.pipeline_mode<synchronous>, transform_indices = @transform_5, window_bounds = array<i64: 2, 200>}, {pipeline_mode = #tpu.pipeline_mode<synchronous>, transform_indices = @transform_6, window_bounds = array<i64: 2, 1>}, {transform_indices = @transform_7, window_bounds = array<i64: 2, 128>}]} {
    %c0 = arith.constant 0 : index
    %c0_0 = arith.constant 0 : index
    %0 = vector.load %arg1[%c0, %c0_0] : memref<5x128xf32, #tpu.memory_space<vmem>>, vector<5x128xf32>
    %1 = arith.truncf %0 : vector<5x128xf32> to vector<5x128xbf16>
    %c0_1 = arith.constant 0 : index
    %c0_2 = arith.constant 0 : index
    %2 = vector.load %arg2[%c0_1, %c0_2] : memref<60x5xbf16, #tpu.memory_space<vmem>>, vector<60x5xbf16>
    %cst = arith.constant dense<0.000000e+00> : vector<60x128xf32>
    %3 = tpu.matmul %2, %1, %cst {dimension_numbers = #tpu.dot_dimension_numbers<[1], [0], [0], [1], [0, 0, 1, 1], [], []>} : vector<60x5xbf16>, vector<5x128xbf16>, vector<60x128xf32> -> vector<60x128xf32>
    %c0_3 = arith.constant 0 : index
    %c0_4 = arith.constant 0 : index
    %4 = vector.load %arg3[%c0_3, %c0_4] : memref<60x1xf32, #tpu.memory_space<vmem>>, vector<60x1xf32>
    %5 = vector.broadcast %4 : vector<60x1xf32> to vector<60x128xf32>
    %6 = arith.addf %3, %5 : vector<60x128xf32>
    %cst_5 = arith.constant 5.000000e-01 : f32
    %7 = vector.broadcast %cst_5 : f32 to vector<60x128xf32>
    %8 = arith.mulf %7, %6 : vector<60x128xf32>
    %9 = math.tanh %8 : vector<60x128xf32>
    %cst_6 = arith.constant 5.000000e-01 : f32
    %10 = vector.broadcast %cst_6 : f32 to vector<60x128xf32>
    %11 = arith.mulf %10, %9 : vector<60x128xf32>
    %cst_7 = arith.constant 5.000000e-01 : f32
    %12 = vector.broadcast %cst_7 : f32 to vector<60x128xf32>
    %13 = arith.addf %11, %12 : vector<60x128xf32>
    %c0_8 = arith.constant 0 : index
    %c0_9 = arith.constant 0 : index
    %14 = vector.load %arg4[%c0_8, %c0_9] : memref<200x60xbf16, #tpu.memory_space<vmem>>, vector<200x60xbf16>
    %15 = arith.truncf %13 : vector<60x128xf32> to vector<60x128xbf16>
    %cst_10 = arith.constant dense<0.000000e+00> : vector<200x128xf32>
    %16 = tpu.matmul %14, %15, %cst_10 {dimension_numbers = #tpu.dot_dimension_numbers<[1], [0], [0], [1], [0, 0, 1, 1], [], []>} : vector<200x60xbf16>, vector<60x128xbf16>, vector<200x128xf32> -> vector<200x128xf32>
    %c0_11 = arith.constant 0 : index
    %c0_12 = arith.constant 0 : index
    %17 = vector.load %arg5[%c0_11, %c0_12] : memref<200x1xf32, #tpu.memory_space<vmem>>, vector<200x1xf32>
    %18 = vector.broadcast %17 : vector<200x1xf32> to vector<200x128xf32>
    %19 = arith.addf %16, %18 : vector<200x128xf32>
    %cst_13 = arith.constant 5.000000e-01 : f32
    %20 = vector.broadcast %cst_13 : f32 to vector<200x128xf32>
    %21 = arith.mulf %20, %19 : vector<200x128xf32>
    %22 = math.tanh %21 : vector<200x128xf32>
    %cst_14 = arith.constant 5.000000e-01 : f32
    %23 = vector.broadcast %cst_14 : f32 to vector<200x128xf32>
    %24 = arith.mulf %23, %22 : vector<200x128xf32>
    %cst_15 = arith.constant 5.000000e-01 : f32
    %25 = vector.broadcast %cst_15 : f32 to vector<200x128xf32>
    %26 = arith.addf %24, %25 : vector<200x128xf32>
    %c0_16 = arith.constant 0 : index
    %c0_17 = arith.constant 0 : index
    %27 = vector.load %arg6[%c0_16, %c0_17] : memref<2x200xbf16, #tpu.memory_space<vmem>>, vector<2x200xbf16>
    %28 = arith.truncf %26 : vector<200x128xf32> to vector<200x128xbf16>
    %cst_18 = arith.constant dense<0.000000e+00> : vector<2x128xf32>
    %29 = tpu.matmul %27, %28, %cst_18 {dimension_numbers = #tpu.dot_dimension_numbers<[1], [0], [0], [1], [0, 0, 1, 1], [], []>} : vector<2x200xbf16>, vector<200x128xbf16>, vector<2x128xf32> -> vector<2x128xf32>
    %c0_19 = arith.constant 0 : index
    %c0_20 = arith.constant 0 : index
    %30 = vector.load %arg7[%c0_19, %c0_20] : memref<2x1xf32, #tpu.memory_space<vmem>>, vector<2x1xf32>
    %31 = vector.broadcast %30 : vector<2x1xf32> to vector<2x128xf32>
    %32 = arith.addf %29, %31 : vector<2x128xf32>
    %cst_21 = arith.constant 5.000000e-01 : f32
    %33 = vector.broadcast %cst_21 : f32 to vector<2x128xf32>
    %34 = arith.mulf %33, %32 : vector<2x128xf32>
    %35 = math.tanh %34 : vector<2x128xf32>
    %cst_22 = arith.constant 5.000000e-01 : f32
    %36 = vector.broadcast %cst_22 : f32 to vector<2x128xf32>
    %37 = arith.mulf %36, %35 : vector<2x128xf32>
    %cst_23 = arith.constant 5.000000e-01 : f32
    %38 = vector.broadcast %cst_23 : f32 to vector<2x128xf32>
    %39 = arith.addf %37, %38 : vector<2x128xf32>
    %c0_24 = arith.constant 0 : index
    %c0_25 = arith.constant 0 : index
    %40 = vector.load %arg8[%c0_24, %c0_25] : memref<2x128xf32, #tpu.memory_space<vmem>>, vector<2x128xf32>
    tpu.vector_store %arg8[%c0_24, %c0_25], %39 {strides = array<i32>} : memref<2x128xf32, #tpu.memory_space<vmem>>, vector<2x128xf32>,
    return
  }
  func.func @transform_0(%arg0: i32) -> (i32, i32) {
    %c0_i32 = arith.constant 0 : i32
    %c0_i32_0 = arith.constant 0 : i32
    return %c0_i32, %arg0 : i32, i32
  }
  func.func @transform_1(%arg0: i32) -> (i32, i32) {
    %c0_i32 = arith.constant 0 : i32
    %c0_i32_0 = arith.constant 0 : i32
    %c0_i32_1 = arith.constant 0 : i32
    return %c0_i32, %c0_i32_0 : i32, i32
  }
  func.func @transform_2(%arg0: i32) -> (i32, i32) {
    %c0_i32 = arith.constant 0 : i32
    %c0_i32_0 = arith.constant 0 : i32
    %c0_i32_1 = arith.constant 0 : i32
    return %c0_i32, %c0_i32_0 : i32, i32
  }
  func.func @transform_3(%arg0: i32) -> (i32, i32) {
    %c0_i32 = arith.constant 0 : i32
    %c0_i32_0 = arith.constant 0 : i32
    %c0_i32_1 = arith.constant 0 : i32
    return %c0_i32, %c0_i32_0 : i32, i32
  }
  func.func @transform_4(%arg0: i32) -> (i32, i32) {
    %c0_i32 = arith.constant 0 : i32
    %c0_i32_0 = arith.constant 0 : i32
    %c0_i32_1 = arith.constant 0 : i32
    return %c0_i32, %c0_i32_0 : i32, i32
  }
  func.func @transform_5(%arg0: i32) -> (i32, i32) {
    %c0_i32 = arith.constant 0 : i32
    %c0_i32_0 = arith.constant 0 : i32
    %c0_i32_1 = arith.constant 0 : i32
    return %c0_i32, %c0_i32_0 : i32, i32
  }
  func.func @transform_6(%arg0: i32) -> (i32, i32) {
    %c0_i32 = arith.constant 0 : i32
    %c0_i32_0 = arith.constant 0 : i32
    %c0_i32_1 = arith.constant 0 : i32
    return %c0_i32, %c0_i32_0 : i32, i32
  }
  func.func @transform_7(%arg0: i32) -> (i32, i32) {
    %c0_i32 = arith.constant 0 : i32
    %c0_i32_0 = arith.constant 0 : i32
    return %c0_i32, %arg0 : i32, i32
  }
}

</mosaic_0001>

<llo_original>
// kernel: tpu_custom_call.1
$region0: #{tpu_custom_call.1}
  #allocation0 [shape = 'u32[]', space=smem, size = 0x4, offset = 0x4, fixed_abs, tag = 'smem constant byte address 0x4 - core index']
  #allocation1 [shape = 'u32[144,128]{1,0:T(1,128)}', space=vmem, size = 0x12000, scoped, tag = 'internal scratch']
  %s0 = inlined_call_operand.vmem [shape: f32[5,128], index: 0, kind: input, shape index: {}]
  %s1 = inlined_call_operand.vmem [shape: bf16[60,5], index: 1, kind: input, shape index: {}]
  %s2 = inlined_call_operand.vmem [shape: f32[60,1], index: 2, kind: input, shape index: {}]
  %s3 = inlined_call_operand.vmem [shape: bf16[200,60], index: 3, kind: input, shape index: {}]
  %s4 = inlined_call_operand.vmem [shape: f32[200,1], index: 4, kind: input, shape index: {}]
  %s5 = inlined_call_operand.vmem [shape: bf16[2,200], index: 5, kind: input, shape index: {}]
  %s6 = inlined_call_operand.vmem [shape: f32[2,1], index: 6, kind: input, shape index: {}]
  %s7 = inlined_call_operand.hbm [shape: f32[2,128], index: 7, kind: output, shape index: {}]
  %s8 = sld [smem:[#allocation0]]
  $region38: #{tpu_custom_call.1} parent=0
    _
  %s10 = ssub.s32 1, %s8
  %s11 = scalar_select 0, %s10, %s8
  $region1: #{tpu_custom_call.1} parent=0
    #allocation2 [shape = 'u8[1024]{0}', space=vmem, size = 0x400, scoped, tag = 'output window, operand 0, single buffered']
    #allocation3 [shape = 's32[1]{0}', space=sflag, size = 0x4, scoped, tag = 'scoped memory for tpu_custom_call.1']
    %12 = vsyncpa [#allocation3], 0
    // Predicated region
    $region2: #{tpu_custom_call.1} parent=1 // pred_check
      _
    $region3: #{tpu_custom_call.1} parent=1 // pred_check_branch
      %14 = sbr.rel (0) target = $region5
    $region4: #{tpu_custom_call.1} parent=1 // pred_region
      _
    $region5: #{tpu_custom_call.1} parent=1 // pred_fallthru
      _
    // Predicated region
    $region6: #{tpu_custom_call.1} parent=1 // pred_check
      _
    $region7: #{tpu_custom_call.1} parent=1 // pred_check_branch
      %16 = sbr.rel (0) target = $region9
    $region8: #{tpu_custom_call.1} parent=1 // pred_region
      _
    $region9: #{tpu_custom_call.1} parent=1 // pred_fallthru
      _
    // Predicated region
    $region10: #{tpu_custom_call.1} parent=1 // pred_check
      _
    $region11: #{tpu_custom_call.1} parent=1 // pred_check_branch
      %18 = sbr.rel (0) target = $region13
    $region12: #{tpu_custom_call.1} parent=1 // pred_region
      _
    $region13: #{tpu_custom_call.1} parent=1 // pred_fallthru
      _
    // Predicated region
    $region14: #{tpu_custom_call.1} parent=1 // pred_check
      _
    $region15: #{tpu_custom_call.1} parent=1 // pred_check_branch
      %20 = sbr.rel (0) target = $region17
    $region16: #{tpu_custom_call.1} parent=1 // pred_region
      _
    $region17: #{tpu_custom_call.1} parent=1 // pred_fallthru
      _
    // Predicated region
    $region18: #{tpu_custom_call.1} parent=1 // pred_check
      _
    $region19: #{tpu_custom_call.1} parent=1 // pred_check_branch
      %22 = sbr.rel (0) target = $region21
    $region20: #{tpu_custom_call.1} parent=1 // pred_region
      _
    $region21: #{tpu_custom_call.1} parent=1 // pred_fallthru
      _
    // Predicated region
    $region22: #{tpu_custom_call.1} parent=1 // pred_check
      _
    $region23: #{tpu_custom_call.1} parent=1 // pred_check_branch
      %24 = sbr.rel (0) target = $region25
    $region24: #{tpu_custom_call.1} parent=1 // pred_region
      _
    $region25: #{tpu_custom_call.1} parent=1 // pred_fallthru
      _
    // Predicated region
    $region26: #{tpu_custom_call.1} parent=1 // pred_check
      _
    $region27: #{tpu_custom_call.1} parent=1 // pred_check_branch
      %26 = sbr.rel (0) target = $region29
    $region28: #{tpu_custom_call.1} parent=1 // pred_region
      _
    $region29: #{tpu_custom_call.1} parent=1 // pred_fallthru
      _
    %v28 = vld [vmem:[%s0] sm:$0x1f]
    %v29 = vpack.c.bf16 %v28, %v28
    %v30 = vld [vmem:[%s1] sm:$0xf]
    %v31 = vld [vmem:[%s1 + $0x4] sm:$0xf]
    %v32 = vld [vmem:[%s1 + $0x8] sm:$0xf]
    %v33 = vld [vmem:[%s1 + $0xc] sm:$0xf]
    %v34 = vld [vmem:[%s1 + $0x10] sm:$0xf]
    %v35 = vld [vmem:[%s1 + $0x14] sm:$0xf]
    %v36 = vld [vmem:[%s1 + $0x18] sm:$0xf]
    %v37 = vld [vmem:[%s1 + $0x1c] sm:$0x3]
    %v38 = vld [vmem:[%s2] sm:$0xff]
    %v39 = vld [vmem:[%s2 + $0x8] sm:$0xff]
    %v40 = vld [vmem:[%s2 + $0x10] sm:$0xff]
    %v41 = vld [vmem:[%s2 + $0x18] sm:$0xff]
    %v42 = vld [vmem:[%s2 + $0x20] sm:$0xff]
    %v43 = vld [vmem:[%s2 + $0x28] sm:$0xff]
    %v44 = vld [vmem:[%s2 + $0x30] sm:$0xff]
    %v45 = vld [vmem:[%s2 + $0x38] sm:$0xf]
    %47 = vset.pattern.permute.xlu0 0
    %48 = vperm.xlu0 %47, %v38
    %v49 = vpop.permute.xlu0 %48
    %52 = vset.pattern.permute.xlu0 0
    %53 = vperm.xlu0 %52, %v39
    %v54 = vpop.permute.xlu0 %53
    %57 = vset.pattern.permute.xlu0 0
    %58 = vperm.xlu0 %57, %v40
    %v59 = vpop.permute.xlu0 %58
    %62 = vset.pattern.permute.xlu0 0
    %63 = vperm.xlu0 %62, %v41
    %v64 = vpop.permute.xlu0 %63
    %67 = vset.pattern.permute.xlu0 0
    %68 = vperm.xlu0 %67, %v42
    %v69 = vpop.permute.xlu0 %68
    %72 = vset.pattern.permute.xlu0 0
    %73 = vperm.xlu0 %72, %v43
    %v74 = vpop.permute.xlu0 %73
    %77 = vset.pattern.permute.xlu0 0
    %78 = vperm.xlu0 %77, %v44
    %v79 = vpop.permute.xlu0 %78
    %82 = vset.pattern.permute.xlu0 0
    %83 = vperm.xlu0 %82, %v45
    %v84 = vpop.permute.xlu0 %83
    %v94 = vunpack.c.l.b16 %v30
    %v95 = vunpack.c.l.b16 %v31
    %v96 = vunpack.c.l.b16 %v32
    %v97 = vunpack.c.l.b16 %v33
    %v98 = vunpack.c.l.b16 %v34
    %v99 = vunpack.c.l.b16 %v35
    %v100 = vunpack.c.l.b16 %v36
    %v101 = vunpack.c.l.b16 %v37
    %v102 = vpack.c.b16 %v95, %v94
    %v103 = vpack.c.b16 %v97, %v96
    %v104 = vpack.c.b16 %v99, %v98
    %v105 = vpack.c.b16 %v101, %v100
    %vm106 = vcmask 39936
    %v108 = vsel %vm106, %v102, 0
    %v111 = vsel %vm106, %v103, 0
    %v114 = vsel %vm106, %v104, 0
    %v117 = vsel %vm106, %v105, 0
    %vm119 = vcmask 1041408
    %vm120 = vcmask 1042432
    %v121 = vsel %vm119, 4294967295, 65535
    %v122 = vsel %vm120, %v121, 0
    %v124 = vand.u32 %v29, %v122
    %126 = vmatprep.subr.bf16.mxu0 0
    %127 = vmatpush1.bf16.msra.mxu0 %v124
    %128 = vmatprep.subr.bf16.mxu0 0
    %129 = vmatpush1.bf16.msra.mxu0 0
    %130 = vmatprep.subr.bf16.mxu0 0
    %131 = vmatpush1.bf16.msra.mxu0 0
    %132 = vmatprep.subr.bf16.mxu0 0
    %133 = vmatpush1.bf16.msra.mxu0 0
    %134 = vmatprep.subr.bf16.mxu0 0
    %135 = vmatpush1.bf16.msra.mxu0 0
    %136 = vmatprep.subr.bf16.mxu0 0
    %137 = vmatpush1.bf16.msra.mxu0 0
    %138 = vmatprep.subr.bf16.mxu0 0
    %139 = vmatpush1.bf16.msra.mxu0 0
    %140 = vmatprep.subr.bf16.mxu0 0
    %141 = vmatpush1.bf16.msra.mxu0 0
    %142 = vmatprep.subr.bf16.mxu0 0
    %143 = vmatpush1.bf16.msra.mxu0 0
    %144 = vmatprep.subr.bf16.mxu0 0
    %145 = vmatpush1.bf16.msra.mxu0 0
    %146 = vmatprep.subr.bf16.mxu0 0
    %147 = vmatpush1.bf16.msra.mxu0 0
    %148 = vmatprep.subr.bf16.mxu0 0
    %149 = vmatpush1.bf16.msra.mxu0 0
    %150 = vmatprep.subr.bf16.mxu0 0
    %151 = vmatpush1.bf16.msra.mxu0 0
    %152 = vmatprep.subr.bf16.mxu0 0
    %153 = vmatpush1.bf16.msra.mxu0 0
    %154 = vmatprep.subr.bf16.mxu0 0
    %155 = vmatpush1.bf16.msra.mxu0 0
    %156 = vmatprep.subr.bf16.mxu0 0
    %157 = vmatpush1.bf16.msra.mxu0 0
    %158 = vmatprep.mubr.bf16.mxu0 0
    %159 = vmatmul.mubr.bf16.gmra.mrb[0].mxu0 %v108
    %v160 = vpop.f32.mrb[0].mxu0
    %v161 = vadd.f32 %v49, %v160
    %v162 = vpop.f32.mrb[0].mxu0
    %v163 = vpop.f32.mrb[0].mxu0
    %v164 = vadd.f32 %v54, %v163
    %v165 = vpop.f32.mrb[0].mxu0
    %166 = vmatprep.mubr.bf16.mxu0 0
    %167 = vmatmul.mubr.bf16.gmra.mrb[0].mxu0 %v111
    %v168 = vpop.f32.mrb[0].mxu0
    %v169 = vadd.f32 %v59, %v168
    %v170 = vpop.f32.mrb[0].mxu0
    %v171 = vpop.f32.mrb[0].mxu0
    %v172 = vadd.f32 %v64, %v171
    %v173 = vpop.f32.mrb[0].mxu0
    %174 = vmatprep.mubr.bf16.mxu0 0
    %175 = vmatmul.mubr.bf16.gmra.mrb[0].mxu0 %v114
    %v176 = vpop.f32.mrb[0].mxu0
    %v177 = vadd.f32 %v69, %v176
    %v178 = vpop.f32.mrb[0].mxu0
    %v179 = vpop.f32.mrb[0].mxu0
    %v180 = vadd.f32 %v74, %v179
    %v181 = vpop.f32.mrb[0].mxu0
    %182 = vmatprep.mubr.bf16.mxu0 0
    %183 = vmatmul.mubr.bf16.gmra.mrb[0].mxu0 %v117
    %v184 = vpop.f32.mrb[0].mxu0
    %v185 = vadd.f32 %v79, %v184
    %v186 = vpop.f32.mrb[0].mxu0
    %v187 = vpop.f32.mrb[0].mxu0
    %v188 = vadd.f32 %v84, %v187
    %v189 = vpop.f32.mrb[0].mxu0
    %190 = vdwg.mxu0
    %v191 = vmul.f32 %v161, 0.5
    %v192 = vmul.f32 %v164, 0.5
    %v193 = vmul.f32 %v169, 0.5
    %v194 = vmul.f32 %v172, 0.5
    %v195 = vmul.f32 %v177, 0.5
    %v196 = vmul.f32 %v180, 0.5
    %v197 = vmul.f32 %v185, 0.5
    %v198 = vmul.f32 %v188, 0.5
    %v199 = vtanh.pop %v191
    %v200 = vtanh.pop %v192
    %v201 = vtanh.pop %v193
    %v202 = vtanh.pop %v194
    %v203 = vtanh.pop %v195
    %v204 = vtanh.pop %v196
    %v205 = vtanh.pop %v197
    %v206 = vtanh.pop %v198
    %v207 = vmul.f32 %v199, 0.5
    %v208 = vmul.f32 %v200, 0.5
    %v209 = vmul.f32 %v201, 0.5
    %v210 = vmul.f32 %v202, 0.5
    %v211 = vmul.f32 %v203, 0.5
    %v212 = vmul.f32 %v204, 0.5
    %v213 = vmul.f32 %v205, 0.5
    %v214 = vmul.f32 %v206, 0.5
    %v215 = vadd.f32 %v207, 0.5
    %v216 = vadd.f32 %v208, 0.5
    %v217 = vadd.f32 %v209, 0.5
    %v218 = vadd.f32 %v210, 0.5
    %v219 = vadd.f32 %v211, 0.5
    %v220 = vadd.f32 %v212, 0.5
    %v221 = vadd.f32 %v213, 0.5
    %v222 = vadd.f32 %v214, 0.5
    %v223 = vld [vmem:[%s3] sm:$0xf]
    %v224 = vld [vmem:[%s3 + $0x4] sm:$0xf]
    %v225 = vld [vmem:[%s3 + $0x8] sm:$0xf]
    %v226 = vld [vmem:[%s3 + $0xc] sm:$0xf]
    %v227 = vld [vmem:[%s3 + $0x10] sm:$0xf]
    %v228 = vld [vmem:[%s3 + $0x14] sm:$0xf]
    %v229 = vld [vmem:[%s3 + $0x18] sm:$0xf]
    %v230 = vld [vmem:[%s3 + $0x1c] sm:$0xf]
    %v231 = vld [vmem:[%s3 + $0x20] sm:$0xf]
    %v232 = vld [vmem:[%s3 + $0x24] sm:$0xf]
    %v233 = vld [vmem:[%s3 + $0x28] sm:$0xf]
    %v234 = vld [vmem:[%s3 + $0x2c] sm:$0xf]
    %v235 = vld [vmem:[%s3 + $0x30] sm:$0xf]
    %v236 = vld [vmem:[%s3 + $0x34] sm:$0xf]
    %v237 = vld [vmem:[%s3 + $0x38] sm:$0xf]
    %v238 = vld [vmem:[%s3 + $0x3c] sm:$0xf]
    %v239 = vld [vmem:[%s3 + $0x40] sm:$0xf]
    %v240 = vld [vmem:[%s3 + $0x44] sm:$0xf]
    %v241 = vld [vmem:[%s3 + $0x48] sm:$0xf]
    %v242 = vld [vmem:[%s3 + $0x4c] sm:$0xf]
    %v243 = vld [vmem:[%s3 + $0x50] sm:$0xf]
    %v244 = vld [vmem:[%s3 + $0x54] sm:$0xf]
    %v245 = vld [vmem:[%s3 + $0x58] sm:$0xf]
    %v246 = vld [vmem:[%s3 + $0x5c] sm:$0xf]
    %v247 = vld [vmem:[%s3 + $0x60] sm:$0xf]
    %v248 = vpack.c.bf16 %v216, %v215
    %v249 = vpack.c.bf16 %v218, %v217
    %v250 = vpack.c.bf16 %v220, %v219
    %v251 = vpack.c.bf16 %v222, %v221
    %v252 = vld [vmem:[%s4] sm:$0xff]
    %v253 = vld [vmem:[%s4 + $0x8] sm:$0xff]
    %v254 = vld [vmem:[%s4 + $0x10] sm:$0xff]
    %v255 = vld [vmem:[%s4 + $0x18] sm:$0xff]
    %v256 = vld [vmem:[%s4 + $0x20] sm:$0xff]
    %v257 = vld [vmem:[%s4 + $0x28] sm:$0xff]
    %v258 = vld [vmem:[%s4 + $0x30] sm:$0xff]
    %v259 = vld [vmem:[%s4 + $0x38] sm:$0xff]
    %v260 = vld [vmem:[%s4 + $0x40] sm:$0xff]
    %v261 = vld [vmem:[%s4 + $0x48] sm:$0xff]
    %v262 = vld [vmem:[%s4 + $0x50] sm:$0xff]
    %v263 = vld [vmem:[%s4 + $0x58] sm:$0xff]
    %v264 = vld [vmem:[%s4 + $0x60] sm:$0xff]
    %v265 = vld [vmem:[%s4 + $0x68] sm:$0xff]
    %v266 = vld [vmem:[%s4 + $0x70] sm:$0xff]
    %v267 = vld [vmem:[%s4 + $0x78] sm:$0xff]
    %v268 = vld [vmem:[%s4 + $0x80] sm:$0xff]
    %v269 = vld [vmem:[%s4 + $0x88] sm:$0xff]
    %v270 = vld [vmem:[%s4 + $0x90] sm:$0xff]
    %v271 = vld [vmem:[%s4 + $0x98] sm:$0xff]
    %v272 = vld [vmem:[%s4 + $0xa0] sm:$0xff]
    %v273 = vld [vmem:[%s4 + $0xa8] sm:$0xff]
    %v274 = vld [vmem:[%s4 + $0xb0] sm:$0xff]
    %v275 = vld [vmem:[%s4 + $0xb8] sm:$0xff]
    %v276 = vld [vmem:[%s4 + $0xc0] sm:$0xff]
    %278 = vset.pattern.permute.xlu0 0
    %279 = vperm.xlu0 %278, %v252
    %v280 = vpop.permute.xlu0 %279
    %283 = vset.pattern.permute.xlu0 0
    %284 = vperm.xlu0 %283, %v253
    %v285 = vpop.permute.xlu0 %284
    %288 = vset.pattern.permute.xlu0 0
    %289 = vperm.xlu0 %288, %v254
    %v290 = vpop.permute.xlu0 %289
    %293 = vset.pattern.permute.xlu0 0
    %294 = vperm.xlu0 %293, %v255
    %v295 = vpop.permute.xlu0 %294
    %298 = vset.pattern.permute.xlu0 0
    %299 = vperm.xlu0 %298, %v256
    %v300 = vpop.permute.xlu0 %299
    %303 = vset.pattern.permute.xlu0 0
    %304 = vperm.xlu0 %303, %v257
    %v305 = vpop.permute.xlu0 %304
    %308 = vset.pattern.permute.xlu0 0
    %309 = vperm.xlu0 %308, %v258
    %v310 = vpop.permute.xlu0 %309
    %313 = vset.pattern.permute.xlu0 0
    %314 = vperm.xlu0 %313, %v259
    %v315 = vpop.permute.xlu0 %314
    %318 = vset.pattern.permute.xlu0 0
    %319 = vperm.xlu0 %318, %v260
    %v320 = vpop.permute.xlu0 %319
    %323 = vset.pattern.permute.xlu0 0
    %324 = vperm.xlu0 %323, %v261
    %v325 = vpop.permute.xlu0 %324
    %328 = vset.pattern.permute.xlu0 0
    %329 = vperm.xlu0 %328, %v262
    %v330 = vpop.permute.xlu0 %329
    %333 = vset.pattern.permute.xlu0 0
    %334 = vperm.xlu0 %333, %v263
    %v335 = vpop.permute.xlu0 %334
    %338 = vset.pattern.permute.xlu0 0
    %339 = vperm.xlu0 %338, %v264
    %v340 = vpop.permute.xlu0 %339
    %343 = vset.pattern.permute.xlu0 0
    %344 = vperm.xlu0 %343, %v265
    %v345 = vpop.permute.xlu0 %344
    %348 = vset.pattern.permute.xlu0 0
    %349 = vperm.xlu0 %348, %v266
    %v350 = vpop.permute.xlu0 %349
    %353 = vset.pattern.permute.xlu0 0
    %354 = vperm.xlu0 %353, %v267
    %v355 = vpop.permute.xlu0 %354
    %358 = vset.pattern.permute.xlu0 0
    %359 = vperm.xlu0 %358, %v268
    %v360 = vpop.permute.xlu0 %359
    %363 = vset.pattern.permute.xlu0 0
    %364 = vperm.xlu0 %363, %v269
    %v365 = vpop.permute.xlu0 %364
    %368 = vset.pattern.permute.xlu0 0
    %369 = vperm.xlu0 %368, %v270
    %v370 = vpop.permute.xlu0 %369
    %373 = vset.pattern.permute.xlu0 0
    %374 = vperm.xlu0 %373, %v271
    %v375 = vpop.permute.xlu0 %374
    %378 = vset.pattern.permute.xlu0 0
    %379 = vperm.xlu0 %378, %v272
    %v380 = vpop.permute.xlu0 %379
    %383 = vset.pattern.permute.xlu0 0
    %384 = vperm.xlu0 %383, %v273
    %v385 = vpop.permute.xlu0 %384
    %388 = vset.pattern.permute.xlu0 0
    %389 = vperm.xlu0 %388, %v274
    %v390 = vpop.permute.xlu0 %389
    %393 = vset.pattern.permute.xlu0 0
    %394 = vperm.xlu0 %393, %v275
    %v395 = vpop.permute.xlu0 %394
    %398 = vset.pattern.permute.xlu0 0
    %399 = vperm.xlu0 %398, %v276
    %v400 = vpop.permute.xlu0 %399
    %v427 = vunpack.c.l.b16 %v223
    %v428 = vunpack.c.l.b16 %v224
    %v429 = vunpack.c.l.b16 %v225
    %v430 = vunpack.c.l.b16 %v226
    %v431 = vunpack.c.l.b16 %v227
    %v432 = vunpack.c.l.b16 %v228
    %v433 = vunpack.c.l.b16 %v229
    %v434 = vunpack.c.l.b16 %v230
    %v435 = vunpack.c.l.b16 %v231
    %v436 = vunpack.c.l.b16 %v232
    %v437 = vunpack.c.l.b16 %v233
    %v438 = vunpack.c.l.b16 %v234
    %v439 = vunpack.c.l.b16 %v235
    %v440 = vunpack.c.l.b16 %v236
    %v441 = vunpack.c.l.b16 %v237
    %v442 = vunpack.c.l.b16 %v238
    %v443 = vunpack.c.l.b16 %v239
    %v444 = vunpack.c.l.b16 %v240
    %v445 = vunpack.c.l.b16 %v241
    %v446 = vunpack.c.l.b16 %v242
    %v447 = vunpack.c.l.b16 %v243
    %v448 = vunpack.c.l.b16 %v244
    %v449 = vunpack.c.l.b16 %v245
    %v450 = vunpack.c.l.b16 %v246
    %v451 = vunpack.c.l.b16 %v247
    %v452 = vpack.c.b16 %v428, %v427
    %v453 = vpack.c.b16 %v430, %v429
    %v454 = vpack.c.b16 %v432, %v431
    %v455 = vpack.c.b16 %v434, %v433
    %v456 = vpack.c.b16 %v436, %v435
    %v457 = vpack.c.b16 %v438, %v437
    %v458 = vpack.c.b16 %v440, %v439
    %v459 = vpack.c.b16 %v442, %v441
    %v460 = vpack.c.b16 %v444, %v443
    %v461 = vpack.c.b16 %v446, %v445
    %v462 = vpack.c.b16 %v448, %v447
    %v463 = vpack.c.b16 %v450, %v449
    %v464 = vpack.c.b16 %v451, %v451
    %vm465 = vcmask 490496
    %v467 = vsel %vm465, %v452, 0
    %v470 = vsel %vm465, %v453, 0
    %v473 = vsel %vm465, %v454, 0
    %v476 = vsel %vm465, %v455, 0
    %v479 = vsel %vm465, %v456, 0
    %v482 = vsel %vm465, %v457, 0
    %v485 = vsel %vm465, %v458, 0
    %v488 = vsel %vm465, %v459, 0
    %v491 = vsel %vm465, %v460, 0
    %v494 = vsel %vm465, %v461, 0
    %v497 = vsel %vm465, %v462, 0
    %v500 = vsel %vm465, %v463, 0
    %v503 = vsel %vm465, %v464, 0
    %vm505 = vcmask 1045504
    %v507 = vsel %vm505, %v251, 0
    %509 = vmatprep.subr.bf16.mxu0 0
    %510 = vmatpush1.bf16.msra.mxu0 %v248
    %511 = vmatprep.subr.bf16.mxu0 0
    %512 = vmatpush1.bf16.msra.mxu0 %v249
    %513 = vmatprep.subr.bf16.mxu0 0
    %514 = vmatpush1.bf16.msra.mxu0 %v250
    %515 = vmatprep.subr.bf16.mxu0 0
    %516 = vmatpush1.bf16.msra.mxu0 %v507
    %517 = vmatprep.subr.bf16.mxu0 0
    %518 = vmatpush1.bf16.msra.mxu0 0
    %519 = vmatprep.subr.bf16.mxu0 0
    %520 = vmatpush1.bf16.msra.mxu0 0
    %521 = vmatprep.subr.bf16.mxu0 0
    %522 = vmatpush1.bf16.msra.mxu0 0
    %523 = vmatprep.subr.bf16.mxu0 0
    %524 = vmatpush1.bf16.msra.mxu0 0
    %525 = vmatprep.subr.bf16.mxu0 0
    %526 = vmatpush1.bf16.msra.mxu0 0
    %527 = vmatprep.subr.bf16.mxu0 0
    %528 = vmatpush1.bf16.msra.mxu0 0
    %529 = vmatprep.subr.bf16.mxu0 0
    %530 = vmatpush1.bf16.msra.mxu0 0
    %531 = vmatprep.subr.bf16.mxu0 0
    %532 = vmatpush1.bf16.msra.mxu0 0
    %533 = vmatprep.subr.bf16.mxu0 0
    %534 = vmatpush1.bf16.msra.mxu0 0
    %535 = vmatprep.subr.bf16.mxu0 0
    %536 = vmatpush1.bf16.msra.mxu0 0
    %537 = vmatprep.subr.bf16.mxu0 0
    %538 = vmatpush1.bf16.msra.mxu0 0
    %539 = vmatprep.subr.bf16.mxu0 0
    %540 = vmatpush1.bf16.msra.mxu0 0
    %541 = vmatprep.mubr.bf16.mxu0 0
    %542 = vmatmul.mubr.bf16.gmra.mrb[0].mxu0 %v467
    %v543 = vpop.f32.mrb[0].mxu0
    %v544 = vadd.f32 %v280, %v543
    %v545 = vpop.f32.mrb[0].mxu0
    %v546 = vpop.f32.mrb[0].mxu0
    %v547 = vadd.f32 %v285, %v546
    %v548 = vpop.f32.mrb[0].mxu0
    %549 = vmatprep.mubr.bf16.mxu0 0
    %550 = vmatmul.mubr.bf16.gmra.mrb[0].mxu0 %v470
    %v551 = vpop.f32.mrb[0].mxu0
    %v552 = vadd.f32 %v290, %v551
    %v553 = vpop.f32.mrb[0].mxu0
    %v554 = vpop.f32.mrb[0].mxu0
    %v555 = vadd.f32 %v295, %v554
    %v556 = vpop.f32.mrb[0].mxu0
    %557 = vmatprep.mubr.bf16.mxu0 0
    %558 = vmatmul.mubr.bf16.gmra.mrb[0].mxu0 %v473
    %v559 = vpop.f32.mrb[0].mxu0
    %v560 = vadd.f32 %v300, %v559
    %v561 = vpop.f32.mrb[0].mxu0
    %v562 = vpop.f32.mrb[0].mxu0
    %v563 = vadd.f32 %v305, %v562
    %v564 = vpop.f32.mrb[0].mxu0
    %565 = vmatprep.mubr.bf16.mxu0 0
    %566 = vmatmul.mubr.bf16.gmra.mrb[0].mxu0 %v476
    %v567 = vpop.f32.mrb[0].mxu0
    %v568 = vadd.f32 %v310, %v567
    %v569 = vpop.f32.mrb[0].mxu0
    %v570 = vpop.f32.mrb[0].mxu0
    %v571 = vadd.f32 %v315, %v570
    %v572 = vpop.f32.mrb[0].mxu0
    %573 = vmatprep.mubr.bf16.mxu0 0
    %574 = vmatmul.mubr.bf16.gmra.mrb[0].mxu0 %v479
    %v575 = vpop.f32.mrb[0].mxu0
    %v576 = vadd.f32 %v320, %v575
    %v577 = vpop.f32.mrb[0].mxu0
    %v578 = vpop.f32.mrb[0].mxu0
    %v579 = vadd.f32 %v325, %v578
    %v580 = vpop.f32.mrb[0].mxu0
    %581 = vmatprep.mubr.bf16.mxu0 0
    %582 = vmatmul.mubr.bf16.gmra.mrb[0].mxu0 %v482
    %v583 = vpop.f32.mrb[0].mxu0
    %v584 = vadd.f32 %v330, %v583
    %v585 = vpop.f32.mrb[0].mxu0
    %v586 = vpop.f32.mrb[0].mxu0
    %v587 = vadd.f32 %v335, %v586
    %v588 = vpop.f32.mrb[0].mxu0
    %589 = vmatprep.mubr.bf16.mxu0 0
    %590 = vmatmul.mubr.bf16.gmra.mrb[0].mxu0 %v485
    %v591 = vpop.f32.mrb[0].mxu0
    %v592 = vadd.f32 %v340, %v591
    %v593 = vpop.f32.mrb[0].mxu0
    %v594 = vpop.f32.mrb[0].mxu0
    %v595 = vadd.f32 %v345, %v594
    %v596 = vpop.f32.mrb[0].mxu0
    %597 = vmatprep.mubr.bf16.mxu0 0
    %598 = vmatmul.mubr.bf16.gmra.mrb[0].mxu0 %v488
    %v599 = vpop.f32.mrb[0].mxu0
    %v600 = vadd.f32 %v350, %v599
    %v601 = vpop.f32.mrb[0].mxu0
    %v602 = vpop.f32.mrb[0].mxu0
    %v603 = vadd.f32 %v355, %v602
    %v604 = vpop.f32.mrb[0].mxu0
    %605 = vmatprep.mubr.bf16.mxu0 0
    %606 = vmatmul.mubr.bf16.gmra.mrb[0].mxu0 %v491
    %v607 = vpop.f32.mrb[0].mxu0
    %v608 = vadd.f32 %v360, %v607
    %v609 = vpop.f32.mrb[0].mxu0
    %v610 = vpop.f32.mrb[0].mxu0
    %v611 = vadd.f32 %v365, %v610
    %v612 = vpop.f32.mrb[0].mxu0
    %613 = vmatprep.mubr.bf16.mxu0 0
    %614 = vmatmul.mubr.bf16.gmra.mrb[0].mxu0 %v494
    %v615 = vpop.f32.mrb[0].mxu0
    %v616 = vadd.f32 %v370, %v615
    %v617 = vpop.f32.mrb[0].mxu0
    %v618 = vpop.f32.mrb[0].mxu0
    %v619 = vadd.f32 %v375, %v618
    %v620 = vpop.f32.mrb[0].mxu0
    %621 = vmatprep.mubr.bf16.mxu0 0
    %622 = vmatmul.mubr.bf16.gmra.mrb[0].mxu0 %v497
    %v623 = vpop.f32.mrb[0].mxu0
    %v624 = vadd.f32 %v380, %v623
    %v625 = vpop.f32.mrb[0].mxu0
    %v626 = vpop.f32.mrb[0].mxu0
    %v627 = vadd.f32 %v385, %v626
    %v628 = vpop.f32.mrb[0].mxu0
    %629 = vmatprep.mubr.bf16.mxu0 0
    %630 = vmatmul.mubr.bf16.gmra.mrb[0].mxu0 %v500
    %v631 = vpop.f32.mrb[0].mxu0
    %v632 = vadd.f32 %v390, %v631
    %v633 = vpop.f32.mrb[0].mxu0
    %v634 = vpop.f32.mrb[0].mxu0
    %v635 = vadd.f32 %v395, %v634
    %v636 = vpop.f32.mrb[0].mxu0
    %637 = vmatprep.mubr.bf16.mxu0 0
    %638 = vmatmul.mubr.bf16.gmra.mrb[0].mxu0 %v503
    %v639 = vpop.f32.mrb[0].mxu0
    %v640 = vadd.f32 %v400, %v639
    %v641 = vpop.f32.mrb[0].mxu0
    %v642 = vpop.f32.mrb[0].mxu0
    %v643 = vpop.f32.mrb[0].mxu0
    %644 = vdwg.mxu0
    %v645 = vmul.f32 %v544, 0.5
    %v646 = vmul.f32 %v547, 0.5
    %v647 = vmul.f32 %v552, 0.5
    %v648 = vmul.f32 %v555, 0.5
    %v649 = vmul.f32 %v560, 0.5
    %v650 = vmul.f32 %v563, 0.5
    %v651 = vmul.f32 %v568, 0.5
    %v652 = vmul.f32 %v571, 0.5
    %v653 = vmul.f32 %v576, 0.5
    %v654 = vmul.f32 %v579, 0.5
    %v655 = vmul.f32 %v584, 0.5
    %v656 = vmul.f32 %v587, 0.5
    %v657 = vmul.f32 %v592, 0.5
    %v658 = vmul.f32 %v595, 0.5
    %v659 = vmul.f32 %v600, 0.5
    %v660 = vmul.f32 %v603, 0.5
    %v661 = vmul.f32 %v608, 0.5
    %v662 = vmul.f32 %v611, 0.5
    %v663 = vmul.f32 %v616, 0.5
    %v664 = vmul.f32 %v619, 0.5
    %v665 = vmul.f32 %v624, 0.5
    %v666 = vmul.f32 %v627, 0.5
    %v667 = vmul.f32 %v632, 0.5
    %v668 = vmul.f32 %v635, 0.5
    %v669 = vmul.f32 %v640, 0.5
    %v670 = vtanh.pop %v645
    %v671 = vtanh.pop %v646
    %v672 = vtanh.pop %v647
    %v673 = vtanh.pop %v648
    %v674 = vtanh.pop %v649
    %v675 = vtanh.pop %v650
    %v676 = vtanh.pop %v651
    %v677 = vtanh.pop %v652
    %v678 = vtanh.pop %v653
    %v679 = vtanh.pop %v654
    %v680 = vtanh.pop %v655
    %v681 = vtanh.pop %v656
    %v682 = vtanh.pop %v657
    %v683 = vtanh.pop %v658
    %v684 = vtanh.pop %v659
    %v685 = vtanh.pop %v660
    %v686 = vtanh.pop %v661
    %v687 = vtanh.pop %v662
    %v688 = vtanh.pop %v663
    %v689 = vtanh.pop %v664
    %v690 = vtanh.pop %v665
    %v691 = vtanh.pop %v666
    %v692 = vtanh.pop %v667
    %v693 = vtanh.pop %v668
    %v694 = vtanh.pop %v669
    %v695 = vmul.f32 %v670, 0.5
    %v696 = vmul.f32 %v671, 0.5
    %v697 = vmul.f32 %v672, 0.5
    %v698 = vmul.f32 %v673, 0.5
    %v699 = vmul.f32 %v674, 0.5
    %v700 = vmul.f32 %v675, 0.5
    %v701 = vmul.f32 %v676, 0.5
    %v702 = vmul.f32 %v677, 0.5
    %v703 = vmul.f32 %v678, 0.5
    %v704 = vmul.f32 %v679, 0.5
    %v705 = vmul.f32 %v680, 0.5
    %v706 = vmul.f32 %v681, 0.5
    %v707 = vmul.f32 %v682, 0.5
    %v708 = vmul.f32 %v683, 0.5
    %v709 = vmul.f32 %v684, 0.5
    %v710 = vmul.f32 %v685, 0.5
    %v711 = vmul.f32 %v686, 0.5
    %v712 = vmul.f32 %v687, 0.5
    %v713 = vmul.f32 %v688, 0.5
    %v714 = vmul.f32 %v689, 0.5
    %v715 = vmul.f32 %v690, 0.5
    %v716 = vmul.f32 %v691, 0.5
    %v717 = vmul.f32 %v692, 0.5
    %v718 = vmul.f32 %v693, 0.5
    %v719 = vmul.f32 %v694, 0.5
    %v720 = vadd.f32 %v695, 0.5
    %v721 = vadd.f32 %v696, 0.5
    %v722 = vadd.f32 %v697, 0.5
    %v723 = vadd.f32 %v698, 0.5
    %v724 = vadd.f32 %v699, 0.5
    %v725 = vadd.f32 %v700, 0.5
    %v726 = vadd.f32 %v701, 0.5
    %v727 = vadd.f32 %v702, 0.5
    %v728 = vadd.f32 %v703, 0.5
    %v729 = vadd.f32 %v704, 0.5
    %v730 = vadd.f32 %v705, 0.5
    %v731 = vadd.f32 %v706, 0.5
    %v732 = vadd.f32 %v707, 0.5
    %v733 = vadd.f32 %v708, 0.5
    %v734 = vadd.f32 %v709, 0.5
    %v735 = vadd.f32 %v710, 0.5
    %v736 = vadd.f32 %v711, 0.5
    %v737 = vadd.f32 %v712, 0.5
    %v738 = vadd.f32 %v713, 0.5
    %v739 = vadd.f32 %v714, 0.5
    %v740 = vadd.f32 %v715, 0.5
    %v741 = vadd.f32 %v716, 0.5
    %v742 = vadd.f32 %v717, 0.5
    %v743 = vadd.f32 %v718, 0.5
    %v744 = vadd.f32 %v719, 0.5
    %v745 = vld [vmem:[%s5] sm:$0x3]
    %v746 = vpack.c.bf16 %v721, %v720
    %v747 = vpack.c.bf16 %v723, %v722
    %v748 = vpack.c.bf16 %v725, %v724
    %v749 = vpack.c.bf16 %v727, %v726
    %v750 = vpack.c.bf16 %v729, %v728
    %v751 = vpack.c.bf16 %v731, %v730
    %v752 = vpack.c.bf16 %v733, %v732
    %v753 = vpack.c.bf16 %v735, %v734
    %v754 = vpack.c.bf16 %v737, %v736
    %v755 = vpack.c.bf16 %v739, %v738
    %v756 = vpack.c.bf16 %v741, %v740
    %v757 = vpack.c.bf16 %v743, %v742
    %v758 = vpack.c.bf16 %v744, %v744
    %v759 = vld [vmem:[%s6] sm:$0x3]
    %761 = vset.pattern.permute.xlu0 0
    %762 = vperm.xlu0 %761, %v759
    %v763 = vpop.permute.xlu0 %762
    %v767 = vunpack.c.l.s4 1966171168
    %v768 = vunpack.c.0.s8 %v767
    %v769 = vlaneseq
    %v770 = vshrl.u32 %v769, 7
    %v771 = vsub.s32 %v768, %v770
    %v772 = vrot.slane %v745, %v771
    %v773 = vcombine.high %v772, %v772
    %v775 = vunpack.c.l.s4 1966171168
    %v776 = vunpack.c.0.s8 %v775
    %v777 = vlaneseq
    %v778 = vshrl.u32 %v777, 7
    %v779 = vsub.s32 %v776, %v778
    %v780 = vrot.slane %v772, %v779
    %v782 = vunpack.c.l.s4 1966171168
    %v783 = vunpack.c.0.s8 %v782
    %v784 = vlaneseq
    %v785 = vshrl.u32 %v784, 7
    %v786 = vsub.s32 %v783, %v785
    %v787 = vrot.slane %v773, %v786
    %vm789 = vcmask 588800
    %v791 = vsel %vm789, %v787, 0
    %vm793 = vcmask 1043456
    %v795 = vsel %vm793, %v758, 0
    %797 = vmatprep.subr.bf16.mxu0 0
    %798 = vmatpush1.bf16.msra.mxu0 %v746
    %799 = vmatprep.subr.bf16.mxu0 0
    %800 = vmatpush1.bf16.msra.mxu0 %v747
    %801 = vmatprep.subr.bf16.mxu0 0
    %802 = vmatpush1.bf16.msra.mxu0 %v748
    %803 = vmatprep.subr.bf16.mxu0 0
    %804 = vmatpush1.bf16.msra.mxu0 %v749
    %805 = vmatprep.subr.bf16.mxu0 0
    %806 = vmatpush1.bf16.msra.mxu0 %v750
    %807 = vmatprep.subr.bf16.mxu0 0
    %808 = vmatpush1.bf16.msra.mxu0 %v751
    %809 = vmatprep.subr.bf16.mxu0 0
    %810 = vmatpush1.bf16.msra.mxu0 %v752
    %811 = vmatprep.subr.bf16.mxu0 0
    %812 = vmatpush1.bf16.msra.mxu0 %v753
    %813 = vmatprep.subr.bf16.mxu0 0
    %814 = vmatpush1.bf16.msra.mxu0 %v754
    %815 = vmatprep.subr.bf16.mxu0 0
    %816 = vmatpush1.bf16.msra.mxu0 %v755
    %817 = vmatprep.subr.bf16.mxu0 0
    %818 = vmatpush1.bf16.msra.mxu0 %v756
    %819 = vmatprep.subr.bf16.mxu0 0
    %820 = vmatpush1.bf16.msra.mxu0 %v757
    %821 = vmatprep.subr.bf16.mxu0 0
    %822 = vmatpush1.bf16.msra.mxu0 %v795
    %823 = vmatprep.subr.bf16.mxu0 0
    %824 = vmatpush1.bf16.msra.mxu0 0
    %825 = vmatprep.subr.bf16.mxu0 0
    %826 = vmatpush1.bf16.msra.mxu0 0
    %827 = vmatprep.subr.bf16.mxu0 0
    %828 = vmatpush1.bf16.msra.mxu0 0
    %829 = vmatprep.mubr.bf16.mxu0 %v791
    %830 = vmatmul.mubr.bf16.gmra.mrb[0].mxu0 %v780
    %v831 = vpop.f32.mrb[0].mxu0
    %v832 = vadd.f32 %v763, %v831
    %v833 = vpop.f32.mrb[0].mxu0
    %v834 = vpop.f32.mrb[0].mxu0
    %v835 = vpop.f32.mrb[0].mxu0
    %836 = vdwg.mxu0
    %v837 = vmul.f32 %v832, 0.5
    %v838 = vtanh.pop %v837
    %v839 = vmul.f32 %v838, 0.5
    %v840 = vadd.f32 %v839, 0.5
    %841 = vst [vmem:[#allocation2] sm:$0x3] %v840
    // Predicated region
    $region30: #{tpu_custom_call.1} parent=1 // pred_check
      _
    $region31: #{tpu_custom_call.1} parent=1 // pred_check_branch
      %843 = sbr.rel (0) target = $region33
    $region32: #{tpu_custom_call.1} parent=1 // pred_region
      %s845 = ssub.s32 32, 32
      %846 = vsyncadd [#allocation3], %s845
      %s848 = sshll.u32 [#allocation2], 4
      %s849 = int_to_ptr.vmem [resolvable:$true] %s848
      %851 = dma.vmem_to_hbm [thread:$0]  %s849, 32, %s7, [#allocation3]
    $region33: #{tpu_custom_call.1} parent=1 // pred_fallthru
      _
    // Predicated region
    $region34: #{tpu_custom_call.1} parent=1 // pred_check
      _
    $region35: #{tpu_custom_call.1} parent=1 // pred_check_branch
      %853 = sbr.rel (0) target = $region37
    $region36: #{tpu_custom_call.1} parent=1 // pred_region
      %854 = dma.done [#allocation3], 32
    $region37: #{tpu_custom_call.1} parent=1 // pred_fallthru
      _
    %855 = vsyncpa [#allocation3], 1

</llo_original>
